<compile_context>
chip_gen: v6e
topology: v6e:2x2x1
jax: 0.10.0
libtpu: 0.0.40
codegen_flags: <defaults>
</compile_context>

<pallas_src>
import jax
import jax.numpy as jnp
from jax.experimental import pallas as pl
from jax.experimental.pallas import tpu as pltpu

INPUT_SIZE = 1
HIDDEN_SIZE = 15
OUTPUT_SIZE = 1

LANE = 128            # TPU lane width
SUBLANE = 8           # TPU sublane count (f32)
HIDDEN_PAD = ((HIDDEN_SIZE + SUBLANE - 1) // SUBLANE) * SUBLANE   # 16
BATCH_TILE = 512      # lane-dense batch tile (multiple of 128)


def mlp_kernel(x_ref, p_ref, o_ref):
    # x_ref: (1, TB)       -- batch on the lane axis (lane-dense).
    # p_ref: (HIDDEN_PAD, 4) packed params:
    #        [:, 0] = w1 (fc1 weight, in_features=1), [:, 1] = b1,
    #        [:, 2] = w2 (fc2 weight, out_features=1), [0, 3] = b2.
    #        Rows >= HIDDEN_SIZE are zero, so they add nothing in fc2.
    x = x_ref[...]                       # (1, TB)
    p = p_ref[...]                       # (HP, 4)
    w1 = p[:, 0:1]                       # (HP, 1)
    b1 = p[:, 1:2]                       # (HP, 1)
    w2 = p[:, 2:3]                       # (HP, 1)
    b2 = p[0:1, 3:4]                     # (1, 1)

    # fc1 + ReLU: K == 1  ->  pure VPU broadcast multiply-add.
    h = jnp.maximum(w1 * x + b1, 0.0)                      # (HP, TB)
    # fc2: N == 1  ->  weighted cross-sublane reduce (XLU), not a matmul.
    y = jnp.sum(w2 * h, axis=0, keepdims=True) + b2        # (1, TB)
    o_ref[...] = y.astype(o_ref.dtype)


def pack_params(w1, b1, w2, b2):
    """Pack (1,H) w1, (1,H) b1, (H,1) w2, (1,1) b2 into one (HIDDEN_PAD, 4) slab."""
    p = jnp.zeros((HIDDEN_PAD, 4), jnp.float32)
    p = p.at[:HIDDEN_SIZE, 0].set(w1[0, :])
    p = p.at[:HIDDEN_SIZE, 1].set(b1[0, :])
    p = p.at[:HIDDEN_SIZE, 2].set(w2[:, 0])
    p = p.at[0, 3].set(b2[0, 0])
    return p


@jax.jit
def _mlp_forward_padded(x_lanes, packed_params, tile_b):
    del tile_b  # only used for shape specialization via closure below
    raise NotImplementedError  # replaced below; kept to avoid accidental use


def mlp_forward(x, packed_params):
    """x: (B, 1) float32 (PyTorch layout). Returns (B, 1) float32."""
    batch = x.shape[0]

    # Pad batch up to a lane-dense tile and present it on the lane axis.
    padded = ((batch + LANE - 1) // LANE) * LANE
    tile_b = min(BATCH_TILE, padded)
    padded = ((padded + tile_b - 1) // tile_b) * tile_b
    x_lanes = jnp.zeros((1, padded), jnp.float32).at[0, :batch].set(x[:, 0])

    grid = (padded // tile_b,)
    out = pl.pallas_call(
        mlp_kernel,
        out_shape=jax.ShapeDtypeStruct((1, padded), jnp.float32),
        grid=grid,
        in_specs=[
            # Lane-dense batch tiles, streamed along the grid.
            pl.BlockSpec((1, tile_b), lambda i: (0, i)),
            # Packed params: constant index_map -> VMEM-resident across grid.
            pl.BlockSpec((HIDDEN_PAD, 4), lambda i: (0, 0)),
        ],
        out_specs=pl.BlockSpec((1, tile_b), lambda i: (0, i)),
        compiler_params=pltpu.CompilerParams(
            dimension_semantics=("parallel",)),
    )(x_lanes, packed_params)

    # Back to the module's (B, 1) layout.
    return out[0, :batch][:, None]


def init_params(key):
    """Deterministic init mimicking PyTorch U(-1/sqrt(fan_in), 1/sqrt(fan_in))."""
    k1, k2, k3, k4 = jax.random.split(key, 4)
    bound1 = 1.0 / (INPUT_SIZE ** 0.5)
    bound2 = 1.0 / (HIDDEN_SIZE ** 0.5)
    # Stored already transposed: (in_features, out_features), so ref is x @ W + b.
    w1 = jax.random.uniform(k1, (INPUT_SIZE, HIDDEN_SIZE), jnp.float32,
                            minval=-bound1, maxval=bound1)
    b1 = jax.random.uniform(k2, (1, HIDDEN_SIZE), jnp.float32,
                            minval=-bound1, maxval=bound1)
    w2 = jax.random.uniform(k3, (HIDDEN_SIZE, OUTPUT_SIZE), jnp.float32,
                            minval=-bound2, maxval=bound2)
    b2 = jax.random.uniform(k4, (1, OUTPUT_SIZE), jnp.float32,
                            minval=-bound2, maxval=bound2)
    return w1, b1, w2, b2


def reference(x, w1, b1, w2, b2):
    return jnp.maximum(x @ w1 + b1, 0.0) @ w2 + b2


if __name__ == "__main__":
    key = jax.random.PRNGKey(0)
    kx, kx2, kp = jax.random.split(key, 3)

    w1, b1, w2, b2 = init_params(kp)
    packed = pack_params(w1, b1, w2, b2)

    # Small batch (single grid step, padded up to one 128-lane tile).
    batch = 8
    x = jax.random.normal(kx, (batch, INPUT_SIZE), jnp.float32)
    out = jax.block_until_ready(mlp_forward(x, packed))
    ref = reference(x, w1, b1, w2, b2)
    assert out.shape == (batch, OUTPUT_SIZE)
    assert jnp.allclose(out, ref, atol=1e-5, rtol=1e-5)

    # Non-multiple-of-tile batch (exercises padding + multi-step parallel grid).
    batch2 = 640
    x2 = jax.random.normal(kx2, (batch2, INPUT_SIZE), jnp.float32)
    out2 = jax.block_until_ready(mlp_forward(x2, packed))
    ref2 = reference(x2, w1, b1, w2, b2)
    assert out2.shape == (batch2, OUTPUT_SIZE)
    assert jnp.allclose(out2, ref2, atol=1e-5, rtol=1e-5)

    print("KERNEL_OK")
</pallas_src>

<mosaic_0001>
module attributes {stable_mosaic.version = 11 : i64} {
  func.func @mlp_kernel(%arg0: i32, %arg1: memref<1x128xf32, #tpu.memory_space<vmem>>, %arg2: memref<16x4xf32, #tpu.memory_space<vmem>>, %arg3: memref<1x128xf32, #tpu.memory_space<vmem>>) attributes {dimension_semantics = [#tpu.dimension_semantics<parallel>], iteration_bounds = array<i64: 1>, scalar_prefetch = 0 : i64, scratch_operands = 0 : i64, tpu.core_type = #tpu.core_type<tc>, window_params = [{transform_indices = @transform_0, window_bounds = array<i64: 1, 128>}, {pipeline_mode = #tpu.pipeline_mode<synchronous>, transform_indices = @transform_1, window_bounds = array<i64: 16, 4>}, {transform_indices = @transform_2, window_bounds = array<i64: 1, 128>}]} {
    %c0 = arith.constant 0 : index
    %c0_0 = arith.constant 0 : index
    %0 = vector.load %arg1[%c0, %c0_0] : memref<1x128xf32, #tpu.memory_space<vmem>>, vector<1x128xf32>
    %c0_1 = arith.constant 0 : index
    %c0_2 = arith.constant 0 : index
    %1 = vector.load %arg2[%c0_1, %c0_2] : memref<16x4xf32, #tpu.memory_space<vmem>>, vector<16x4xf32>
    %2 = vector.extract_strided_slice %1 {offsets = [0, 0], sizes = [16, 1], strides = [1, 1]} : vector<16x4xf32> to vector<16x1xf32>
    %3 = vector.extract_strided_slice %1 {offsets = [0, 1], sizes = [16, 1], strides = [1, 1]} : vector<16x4xf32> to vector<16x1xf32>
    %4 = vector.extract_strided_slice %1 {offsets = [0, 2], sizes = [16, 1], strides = [1, 1]} : vector<16x4xf32> to vector<16x1xf32>
    %5 = vector.extract_strided_slice %1 {offsets = [0, 3], sizes = [1, 1], strides = [1, 1]} : vector<16x4xf32> to vector<1x1xf32>
    %6 = vector.broadcast %2 : vector<16x1xf32> to vector<16x128xf32>
    %7 = vector.broadcast %0 : vector<1x128xf32> to vector<16x128xf32>
    %8 = arith.mulf %6, %7 : vector<16x128xf32>
    %9 = vector.broadcast %3 : vector<16x1xf32> to vector<16x128xf32>
    %10 = arith.addf %8, %9 : vector<16x128xf32>
    %cst = arith.constant 0.000000e+00 : f32
    %11 = vector.broadcast %cst : f32 to vector<16x128xf32>
    %12 = arith.maximumf %10, %11 : vector<16x128xf32>
    %13 = vector.broadcast %4 : vector<16x1xf32> to vector<16x128xf32>
    %14 = arith.mulf %13, %12 : vector<16x128xf32>
    %cst_3 = arith.constant dense<0.000000e+00> : vector<128xf32>
    %15 = vector.multi_reduction <add>, %14, %cst_3 [0] : vector<16x128xf32> to vector<128xf32>
    %16 = vector.shape_cast %15 : vector<128xf32> to vector<1x128xf32>
    %17 = vector.broadcast %5 : vector<1x1xf32> to vector<1x128xf32>
    %18 = arith.addf %16, %17 : vector<1x128xf32>
    %c0_4 = arith.constant 0 : index
    %c0_5 = arith.constant 0 : index
    %19 = vector.load %arg3[%c0_4, %c0_5] : memref<1x128xf32, #tpu.memory_space<vmem>>, vector<1x128xf32>
    tpu.vector_store %arg3[%c0_4, %c0_5], %18 {strides = array<i32>} : memref<1x128xf32, #tpu.memory_space<vmem>>, vector<1x128xf32>,
    return
  }
  func.func @transform_0(%arg0: i32) -> (i32, i32) {
    %c0_i32 = arith.constant 0 : i32
    %c0_i32_0 = arith.constant 0 : i32
    return %c0_i32, %arg0 : i32, i32
  }
  func.func @transform_1(%arg0: i32) -> (i32, i32) {
    %c0_i32 = arith.constant 0 : i32
    %c0_i32_0 = arith.constant 0 : i32
    %c0_i32_1 = arith.constant 0 : i32
    return %c0_i32, %c0_i32_0 : i32, i32
  }
  func.func @transform_2(%arg0: i32) -> (i32, i32) {
    %c0_i32 = arith.constant 0 : i32
    %c0_i32_0 = arith.constant 0 : i32
    return %c0_i32, %arg0 : i32, i32
  }
}

</mosaic_0001>

<llo_original>
// kernel: tpu_custom_call.1
$region0: #{tpu_custom_call.1}
  #allocation0 [shape = 'u32[]', space=smem, size = 0x4, offset = 0x4, fixed_abs, tag = 'smem constant byte address 0x4 - core index']
  #allocation1 [shape = 'u32[144,128]{1,0:T(1,128)}', space=vmem, size = 0x12000, scoped, tag = 'internal scratch']
  %s0 = inlined_call_operand.vmem [shape: f32[1,128], index: 0, kind: input, shape index: {}]
  %s1 = inlined_call_operand.vmem [shape: f32[16,4], index: 1, kind: input, shape index: {}]
  %s2 = inlined_call_operand.hbm [shape: f32[1,128], index: 2, kind: output, shape index: {}]
  %s3 = sld [smem:[#allocation0]]
  $region18: #{tpu_custom_call.1} parent=0
    _
  %s5 = ssub.s32 1, %s3
  %s6 = scalar_select 0, %s5, %s3
  $region1: #{tpu_custom_call.1} parent=0
    #allocation2 [shape = 'u8[512]{0}', space=vmem, size = 0x400, scoped, tag = 'output window, operand 0, single buffered']
    #allocation3 [shape = 's32[1]{0}', space=sflag, size = 0x4, scoped, tag = 'scoped memory for tpu_custom_call.1']
    %7 = vsyncpa [#allocation3], 0
    // Predicated region
    $region2: #{tpu_custom_call.1} parent=1 // pred_check
      _
    $region3: #{tpu_custom_call.1} parent=1 // pred_check_branch
      %9 = sbr.rel (0) target = $region5
    $region4: #{tpu_custom_call.1} parent=1 // pred_region
      _
    $region5: #{tpu_custom_call.1} parent=1 // pred_fallthru
      _
    // Predicated region
    $region6: #{tpu_custom_call.1} parent=1 // pred_check
      _
    $region7: #{tpu_custom_call.1} parent=1 // pred_check_branch
      %11 = sbr.rel (0) target = $region9
    $region8: #{tpu_custom_call.1} parent=1 // pred_region
      _
    $region9: #{tpu_custom_call.1} parent=1 // pred_fallthru
      _
    %v12 = vld [vmem:[%s0] sm:$0x1]
    %v13 = vld [vmem:[%s1] sm:$0xff]
    %v14 = vld [vmem:[%s1 + $0x8] sm:$0xff]
    %16 = vset.pattern.permute.xlu0 0
    %17 = vperm.xlu0 %16, %v13
    %v18 = vpop.permute.xlu0 %17
    %21 = vset.pattern.permute.xlu0 0
    %22 = vperm.xlu0 %21, %v14
    %v23 = vpop.permute.xlu0 %22
    %v26 = vlaneseq
    %v27 = vshrl.u32 %v26, 7
    %v28 = vsub.s32 0, %v27
    %v29 = vrot.slane %v12, %v28
    %v31 = vmul.f32 %v18, %v29
    %v32 = vmul.f32 %v23, %v29
    %33 = vset.pattern.permute.xlu0 1
    %34 = vperm.xlu0 %33, %v13
    %v35 = vpop.permute.xlu0 %34
    %37 = vset.pattern.permute.xlu0 1
    %38 = vperm.xlu0 %37, %v14
    %v39 = vpop.permute.xlu0 %38
    %v41 = vadd.f32 %v31, %v35
    %v42 = vadd.f32 %v32, %v39
    %v43 = vmax.f32 %v41, 0.0
    %v44 = vmax.f32 %v42, 0.0
    %45 = vset.pattern.permute.xlu0 2
    %46 = vperm.xlu0 %45, %v13
    %v47 = vpop.permute.xlu0 %46
    %49 = vset.pattern.permute.xlu0 2
    %50 = vperm.xlu0 %49, %v14
    %v51 = vpop.permute.xlu0 %50
    %v53 = vmul.f32 %v47, %v43
    %v54 = vmul.f32 %v51, %v44
    %v55 = vadd.f32 %v53, %v54
    %v56 = vrot.slane %v55, 4
    %v57 = vadd.f32 %v55, %v56
    %v58 = vrot.slane %v57, 2
    %v59 = vadd.f32 %v57, %v58
    %v60 = vrot.slane %v59, 1
    %v61 = vadd.f32 %v59, %v60
    %62 = vset.pattern.permute.xlu0 3
    %63 = vperm.xlu0 %62, %v13
    %v64 = vpop.permute.xlu0 %63
    %v66 = vadd.f32 %v61, %v64
    %67 = vst [vmem:[#allocation2] sm:$0x1] %v66
    // Predicated region
    $region10: #{tpu_custom_call.1} parent=1 // pred_check
      _
    $region11: #{tpu_custom_call.1} parent=1 // pred_check_branch
      %69 = sbr.rel (0) target = $region13
    $region12: #{tpu_custom_call.1} parent=1 // pred_region
      %s71 = ssub.s32 16, 16
      %72 = vsyncadd [#allocation3], %s71
      %s74 = sshll.u32 [#allocation2], 4
      %s75 = int_to_ptr.vmem [resolvable:$true] %s74
      %77 = dma.vmem_to_hbm [thread:$0]  %s75, 16, %s2, [#allocation3]
    $region13: #{tpu_custom_call.1} parent=1 // pred_fallthru
      _
    // Predicated region
    $region14: #{tpu_custom_call.1} parent=1 // pred_check
      _
    $region15: #{tpu_custom_call.1} parent=1 // pred_check_branch
      %79 = sbr.rel (0) target = $region17
    $region16: #{tpu_custom_call.1} parent=1 // pred_region
      %80 = dma.done [#allocation3], 16
    $region17: #{tpu_custom_call.1} parent=1 // pred_fallthru
      _
    %81 = vsyncpa [#allocation3], 1

</llo_original>
